<compile_context>
chip_gen: v5e
topology: v5e:2x2
jax: 0.10.0
libtpu: 0.0.40
codegen_flags: <defaults>
</compile_context>

<pallas_src>
import functools

import jax
import jax.numpy as jnp
from jax.experimental import pallas as pl
from jax.experimental.pallas import tpu as pltpu

LANES = 128


def _scaled_tanh_kernel(x_ref, o_ref, *, scaling):
    # Elementwise hot path: tanh on the EUP, scale on the VPU.
    o_ref[...] = jnp.tanh(x_ref[...]) * scaling


def _sublane_multiple(dtype) -> int:
    # Sub-32-bit dtypes pack along sublanes: f32 -> 8, bf16 -> 16, int8/fp8 -> 32.
    itemsize = jnp.dtype(dtype).itemsize
    return max(8, 32 // max(itemsize, 1))


def scaled_tanh(x, scaling: float, *, block_rows: int = 4096):
    """Applies tanh(x) * scaling elementwise. Works for any shape / float dtype."""
    orig_shape = x.shape
    n = x.size
    sub = _sublane_multiple(x.dtype)

    ragged = (n % LANES) != 0
    if ragged:
        # Rare fallback: pad the flat array out to a whole number of lanes.
        # TODO(synk): for very large ragged inputs, split off only the tail
        # instead of padding the whole array.
        rows = pl.cdiv(n, LANES)
        pad = rows * LANES - n
        x2d = jnp.pad(x.reshape(-1), (0, pad)).reshape(rows, LANES)
    else:
        # Common case: free reshape to a lane-dense 2D slab — no extra copies.
        rows = n // LANES
        x2d = x.reshape(rows, LANES)

    # Fixed tile + cdiv grid; Pallas masks the partial last block.
    if rows <= block_rows:
        tr = rows  # block == full array dim: exempt from the (8,128) rule
    else:
        tr = (block_rows // sub) * sub  # align to the dtype's sublane packing
    grid = (pl.cdiv(rows, tr),)

    out2d = pl.pallas_call(
        functools.partial(_scaled_tanh_kernel, scaling=scaling),
        out_shape=jax.ShapeDtypeStruct((rows, LANES), x.dtype),
        grid_spec=pltpu.PrefetchScalarGridSpec(
            num_scalar_prefetch=0,
            grid=grid,
            in_specs=[pl.BlockSpec((tr, LANES), lambda i: (i, 0))],
            out_specs=pl.BlockSpec((tr, LANES), lambda i: (i, 0)),
        ),
        compiler_params=pltpu.CompilerParams(
            dimension_semantics=("parallel",),  # megacore-shardable on v7x
        ),
    )(x2d)

    if ragged:
        return out2d.reshape(-1)[:n].reshape(orig_shape)
    return out2d.reshape(orig_shape)


if __name__ == "__main__":
    # ScaledTanH(scaling) has no learned parameters; scaling is a constructor arg.
    scaling = 2.5

    key = jax.random.PRNGKey(0)
    x = jax.random.normal(key, (2, 4, 16, 16), dtype=jnp.float32)  # NCHW

    out = scaled_tanh(x, scaling)
    out = jax.block_until_ready(out)

    # Correctness check against the pure-JAX reference.
    ref = jnp.tanh(x) * scaling
    assert out.shape == x.shape and out.dtype == x.dtype
    assert jnp.allclose(out, ref, atol=1e-6, rtol=1e-6)

    print("KERNEL_OK")
</pallas_src>

<mosaic_0001>
module attributes {stable_mosaic.version = 11 : i64} {
  func.func @_scaled_tanh_kernel(%arg0: i32, %arg1: memref<16x128xf32, #tpu.memory_space<vmem>>, %arg2: memref<16x128xf32, #tpu.memory_space<vmem>>) attributes {dimension_semantics = [#tpu.dimension_semantics<parallel>], iteration_bounds = array<i64: 1>, scalar_prefetch = 0 : i64, scratch_operands = 0 : i64, tpu.core_type = #tpu.core_type<tc>, window_params = [{transform_indices = @transform_0, window_bounds = array<i64: 16, 128>}, {transform_indices = @transform_1, window_bounds = array<i64: 16, 128>}]} {
    %c0 = arith.constant 0 : index
    %c0_0 = arith.constant 0 : index
    %0 = vector.load %arg1[%c0, %c0_0] : memref<16x128xf32, #tpu.memory_space<vmem>>, vector<16x128xf32>
    %1 = math.tanh %0 : vector<16x128xf32>
    %cst = arith.constant 2.500000e+00 : f32
    %2 = vector.broadcast %cst : f32 to vector<16x128xf32>
    %3 = arith.mulf %1, %2 : vector<16x128xf32>
    %c0_1 = arith.constant 0 : index
    %c0_2 = arith.constant 0 : index
    %4 = vector.load %arg2[%c0_1, %c0_2] : memref<16x128xf32, #tpu.memory_space<vmem>>, vector<16x128xf32>
    tpu.vector_store %arg2[%c0_1, %c0_2], %3 {strides = array<i32>} : memref<16x128xf32, #tpu.memory_space<vmem>>, vector<16x128xf32>,
    return
  }
  func.func @transform_0(%arg0: i32) -> (i32, i32) {
    %c0_i32 = arith.constant 0 : i32
    %c0_i32_0 = arith.constant 0 : i32
    return %arg0, %c0_i32 : i32, i32
  }
  func.func @transform_1(%arg0: i32) -> (i32, i32) {
    %c0_i32 = arith.constant 0 : i32
    %c0_i32_0 = arith.constant 0 : i32
    return %arg0, %c0_i32 : i32, i32
  }
}

</mosaic_0001>

<llo_original>
// kernel: tpu_custom_call.1
$region0: #{tpu_custom_call.1}
  #allocation0 [shape = 'u32[]', space=smem, size = 0x4, offset = 0x4, fixed_abs, tag = 'smem constant byte address 0x4 - core index']
  #allocation1 [shape = 'u32[72,128]{1,0:T(1,128)}', space=vmem, size = 0x9000, scoped, tag = 'internal scratch']
  %s0 = inlined_call_operand.hbm [shape: f32[16,128], index: 0, kind: input, shape index: {}]
  %s1 = inlined_call_operand.hbm [shape: f32[16,128], index: 1, kind: output, shape index: {}]
  %s2 = sld [smem:[#allocation0]]
  $region18: #{tpu_custom_call.1} parent=0
    _
  %s4 = ssub.s32 1, %s2
  %s5 = scalar_select 0, %s4, %s2
  $region1: #{tpu_custom_call.1} parent=0
    #allocation2 [shape = 'u8[8192]{0}', space=vmem, size = 0x2000, scoped, tag = 'input window, operand 0, single buffered']
    #allocation3 [shape = 's32[1]{0}', space=sflag, size = 0x4, scoped, tag = 'scoped memory for tpu_custom_call.1']
    #allocation4 [shape = 's32[1]{0}', space=sflag, size = 0x4, scoped, tag = 'scoped memory for tpu_custom_call.1']
    #allocation5 [shape = 'u8[8192]{0}', space=vmem, size = 0x2000, scoped, tag = 'output window, operand 0, single buffered']
    %6 = vsyncpa [#allocation3], 0
    %7 = vsyncpa [#allocation4], 0
    // Predicated region
    $region2: #{tpu_custom_call.1} parent=1 // pred_check
      _
    $region3: #{tpu_custom_call.1} parent=1 // pred_check_branch
      %9 = sbr.rel (0) target = $region5
    $region4: #{tpu_custom_call.1} parent=1 // pred_region
      %11 = vsyncadd [#allocation3], 0
      %s12 = sshll.u32 %s0, 4
      %s13 = int_to_ptr.hbm [resolvable:$true] %s12
      %s14 = sshll.u32 [#allocation2], 4
      %s15 = int_to_ptr.vmem [resolvable:$true] %s14
      %20 = dma.hbm_to_vmem [thread:$0]  %s13, 256, %s15, [#allocation3], 128, 128, 8
    $region5: #{tpu_custom_call.1} parent=1 // pred_fallthru
      _
    // Predicated region
    $region6: #{tpu_custom_call.1} parent=1 // pred_check
      _
    $region7: #{tpu_custom_call.1} parent=1 // pred_check_branch
      %22 = sbr.rel (0) target = $region9
    $region8: #{tpu_custom_call.1} parent=1 // pred_region
      %24 = dma.done [#allocation3], 256
    $region9: #{tpu_custom_call.1} parent=1 // pred_fallthru
      _
    %v25 = vld [vmem:[#allocation2] sm:$0xff]
    %v26 = vld [vmem:[#allocation2 + $0x8] sm:$0xff]
    %v27 = vtanh.pop %v25
    %v28 = vtanh.pop %v26
    %v29 = vmul.f32 %v27, 2.5
    %v30 = vmul.f32 %v28, 2.5
    %31 = vst [vmem:[#allocation5] sm:$0xff] %v29
    %32 = vst [vmem:[#allocation5 + $0x8] sm:$0xff] %v30
    // Predicated region
    $region10: #{tpu_custom_call.1} parent=1 // pred_check
      _
    $region11: #{tpu_custom_call.1} parent=1 // pred_check_branch
      %34 = sbr.rel (0) target = $region13
    $region12: #{tpu_custom_call.1} parent=1 // pred_region
      %36 = vsyncadd [#allocation4], 0
      %s37 = sshll.u32 [#allocation5], 4
      %s38 = int_to_ptr.vmem [resolvable:$true] %s37
      %s39 = sshll.u32 %s1, 4
      %s40 = int_to_ptr.hbm [resolvable:$true] %s39
      %45 = dma.vmem_to_hbm [thread:$0]  %s38, 256, %s40, [#allocation4], 128, 128, 8
    $region13: #{tpu_custom_call.1} parent=1 // pred_fallthru
      _
    // Predicated region
    $region14: #{tpu_custom_call.1} parent=1 // pred_check
      _
    $region15: #{tpu_custom_call.1} parent=1 // pred_check_branch
      %47 = sbr.rel (0) target = $region17
    $region16: #{tpu_custom_call.1} parent=1 // pred_region
      %49 = dma.done [#allocation4], 256
    $region17: #{tpu_custom_call.1} parent=1 // pred_fallthru
      _
    %50 = vsyncpa [#allocation3], 1
    %51 = vsyncpa [#allocation4], 1

</llo_original>
